<compile_context>
chip_gen: v7x
topology: tpu7x:2x2x1
jax: 0.10.0
libtpu: 0.0.40
codegen_flags: <defaults>
</compile_context>

<pallas_src>
import jax
import jax.numpy as jnp
from jax.experimental import pallas as pl
from jax.experimental.pallas import tpu as pltpu


def llama_kernel(idx_ref,                       # scalar-prefetch: (N_pad,) int32 in SMEM
                 emb_ref,                       # (V, D) f32 in VMEM (constant block)
                 w1_ref, b1_ref,                # (D, D) bf16, (1, D) f32
                 wgl_ref, bgl_ref,              # (D, 2D) bf16, (1, 2D) f32
                 beta_ref,                      # (1, 1) f32 in SMEM
                 w2_ref, b2_ref,                # (D, tile_v) bf16, (1, tile_v) f32
                 out_ref,                       # (tile_n, tile_v)
                 x_buf, s_buf):                 # VMEM (tile_n, D) f32 / bf16 scratch
    tile_n, D = x_buf.shape
    i = pl.program_id(0)        # row-tile axis ("parallel")
    j = pl.program_id(1)        # vocab-tile axis ("arbitrary", innermost)
    base = i * tile_n

    # Per-row-tile work runs once (at the first vocab tile); its result is
    # cached in VMEM scratch and reused for every remaining vocab tile.
    @pl.when(j == 0)
    def _():
        # --- Embedding: in-kernel row gather from the VMEM-resident table ---
        @pl.loop(0, tile_n)
        def _(r):
            tok = idx_ref[base + r]
            x_buf[pl.ds(r, 1), :] = emb_ref[pl.ds(tok, 1), :]

        # TODO(synk): `llama_blocks` is injected at construction time and not
        # defined in the reference module; treated as identity here.

        x_bf = x_buf[...].astype(jnp.bfloat16)                    # (tn, D)

        # ffn[0]: Linear(d_model, d_model) — bf16 MXU, f32 accumulate.
        h = (jnp.dot(x_bf, w1_ref[...], preferred_element_type=jnp.float32)
             + b1_ref[...])                                       # (tn, D) f32

        # ffn[1]: SwiGLU — fused gate|linear projection, one MXU matmul.
        gl = (jnp.dot(h.astype(jnp.bfloat16), wgl_ref[...],
                      preferred_element_type=jnp.float32)
              + bgl_ref[...])                                     # (tn, 2D) f32
        g = gl[:, :D]
        lin = gl[:, D:]
        beta = beta_ref[0, 0]
        s = g * jax.nn.sigmoid(beta * g) * lin                    # VPU/EUP
        s_buf[...] = s.astype(jnp.bfloat16)

    # ffn[2]: Linear(d_model, vocab) — streamed (D, tile_v) weight slab.
    out_ref[...] = (jnp.dot(s_buf[...], w2_ref[...],
                            preferred_element_type=jnp.float32)
                    + b2_ref[...]).astype(out_ref.dtype)


def _pick_tile_v(v, cap=2048):
    """Largest multiple of 128 dividing v and <= cap (else keep full v)."""
    if v <= cap:
        return v
    t = (cap // 128) * 128
    while t >= 128:
        if v % t == 0:
            return t
        t -= 128
    return v


def llama_forward(idx, params, *, tile_n=None, tile_v=None,
                  out_dtype=jnp.float32):
    B, T = idx.shape
    N = B * T
    V, D = params["emb"].shape

    # Row tile: keep >=2 steps on the parallel axis so both v7x TensorCores
    # get work; 256 rows at larger N to amortize MXU weight pushes.
    if tile_n is None:
        if N >= 512:
            tile_n = 256
        else:
            tile_n = max(8, ((N // 2 + 7) // 8) * 8)
    # Vocab tile: stream w2 / logits in lane-dense slabs.
    if tile_v is None:
        tile_v = _pick_tile_v(V)
    assert tile_v == V or (V % tile_v == 0 and tile_v % 128 == 0)

    # TODO(synk): for embedding tables too large for VMEM, fall back to an HBM
    # row-gather with a small DMA semaphore ring instead of a resident table.
    assert V * D * 4 <= 32 * 1024 * 1024, "emb table must fit in VMEM"

    # Ragged N: pad the row axis, slice the logits afterwards.
    n_row_tiles = -(-N // tile_n)
    N_pad = n_row_tiles * tile_n
    idx_flat = idx.reshape(N).astype(jnp.int32)
    if N_pad != N:
        idx_flat = jnp.pad(idx_flat, (0, N_pad - N))

    # Cast matmul weights to bf16 once; biases and emb table stay f32.
    w1 = params["w1"].astype(jnp.bfloat16)
    wgl = jnp.concatenate([params["wg"], params["wl"]], axis=1).astype(jnp.bfloat16)
    bgl = jnp.concatenate([params["bg"], params["bl"]], axis=1)
    w2 = params["w2"].astype(jnp.bfloat16)

    # Constant-index blocks (emb / w1 / wgl / biases) stay resident across the
    # grid; Mosaic fetches them once (pl.Buffered(1) could halve their VMEM
    # further if needed).
    const = lambda i, j, ids: (0, 0)
    out_itemsize = jnp.dtype(out_dtype).itemsize

    # Explicit scoped-VMEM budget (2x margin covers pipeline double buffers).
    vmem_bytes = (
        V * D * 4                                   # resident emb table
        + D * D * 2 + D * 2 * D * 2                 # w1, wgl (bf16)
        + D * 4 + 2 * D * 4                         # b1, bgl
        + D * tile_v * 2 + tile_v * 4               # streamed w2 / b2 slab
        + tile_n * tile_v * out_itemsize            # out tile
        + tile_n * D * 4 + tile_n * D * 2)          # x_buf, s_buf scratch
    vmem_limit = int(min(128 * 1024 * 1024,
                         max(2 * vmem_bytes + (2 << 20), 32 * 1024 * 1024)))

    flops = 2 * N_pad * (D * D + D * 2 * D + D * V)
    bytes_accessed = (N_pad * 4 + V * D * 4
                      + w1.size * 2 + wgl.size * 2 + w2.size * 2
                      + params["b1"].size * 4 + bgl.size * 4 + params["b2"].size * 4
                      + N_pad * V * out_itemsize)

    logits_flat = pl.pallas_call(
        llama_kernel,
        out_shape=jax.ShapeDtypeStruct((N_pad, V), out_dtype),
        grid_spec=pltpu.PrefetchScalarGridSpec(
            num_scalar_prefetch=1,                            # token ids -> SMEM
            grid=(n_row_tiles, V // tile_v),
            in_specs=[
                pl.BlockSpec((V, D), const),                  # emb table (VMEM resident)
                pl.BlockSpec((D, D), const),                  # ffn[0] weight (bf16)
                pl.BlockSpec((1, D), const),                  # ffn[0] bias
                pl.BlockSpec((D, 2 * D), const),              # fused wg|wl (bf16)
                pl.BlockSpec((1, 2 * D), const),              # fused bg|bl
                pl.BlockSpec(memory_space=pltpu.MemorySpace.SMEM),    # beta scalar
                pl.BlockSpec((D, tile_v), lambda i, j, ids: (0, j)),  # ffn[2] weight slab
                pl.BlockSpec((1, tile_v), lambda i, j, ids: (0, j)),  # ffn[2] bias slab
            ],
            out_specs=pl.BlockSpec((tile_n, tile_v), lambda i, j, ids: (i, j)),
            scratch_shapes=[
                pltpu.VMEM((tile_n, D), jnp.float32),         # gathered embeddings
                pltpu.VMEM((tile_n, D), jnp.bfloat16),        # cached SwiGLU output
            ]),
        compiler_params=pltpu.CompilerParams(
            dimension_semantics=("parallel", "arbitrary"),
            vmem_limit_bytes=vmem_limit),
        cost_estimate=pl.CostEstimate(flops=flops,
                                      transcendentals=N_pad * D,
                                      bytes_accessed=bytes_accessed),
    )(idx_flat, params["emb"], w1, params["b1"], wgl, bgl,
      params["beta"], w2, params["b2"])

    if N_pad != N:
        logits_flat = logits_flat[:N]
    return logits_flat.reshape(B, T, V)


def ref_forward(idx, p):
    x = p["emb"][idx]                                             # (B, T, D)
    h = x @ p["w1"] + p["b1"][0]
    g = h @ p["wg"] + p["bg"][0]
    lin = h @ p["wl"] + p["bl"][0]
    s = g * jax.nn.sigmoid(p["beta"][0, 0] * g) * lin
    return s @ p["w2"] + p["b2"][0]


def init_params(key, vocab_size, d_model):
    ks = jax.random.split(key, 8)
    scale = 0.1
    return {
        "emb": scale * jax.random.normal(ks[0], (vocab_size, d_model), jnp.float32),
        "w1": scale * jax.random.normal(ks[1], (d_model, d_model), jnp.float32),
        "b1": scale * jax.random.normal(ks[2], (1, d_model), jnp.float32),
        "wg": scale * jax.random.normal(ks[3], (d_model, d_model), jnp.float32),
        "bg": scale * jax.random.normal(ks[4], (1, d_model), jnp.float32),
        "wl": scale * jax.random.normal(ks[5], (d_model, d_model), jnp.float32),
        "bl": scale * jax.random.normal(ks[6], (1, d_model), jnp.float32),
        "beta": jnp.ones((1, 1), jnp.float32),                    # SwiGLU beta init = 1
        "w2": scale * jax.random.normal(ks[7], (d_model, vocab_size), jnp.float32),
        "b2": jnp.zeros((1, vocab_size), jnp.float32),
    }


if __name__ == "__main__":
    VOCAB = 256
    D_MODEL = 128
    B, T = 2, 32

    key = jax.random.PRNGKey(0)
    k_params, k_idx = jax.random.split(key)
    params = init_params(k_params, VOCAB, D_MODEL)
    idx = jax.random.randint(k_idx, (B, T), 0, VOCAB, dtype=jnp.int32)

    logits = llama_forward(idx, params)
    logits = jax.block_until_ready(logits)

    expected = ref_forward(idx, params)
    assert logits.shape == (B, T, VOCAB)
    assert jnp.allclose(logits, expected, rtol=2e-2, atol=2e-2), (
        "kernel output mismatch vs reference")

    print("KERNEL_OK")
</pallas_src>

<mosaic_0001>
module attributes {stable_mosaic.version = 11 : i64} {
  func.func @llama_kernel(%arg0: i32, %arg1: i32, %arg2: memref<64xi32, #tpu.memory_space<smem>>, %arg3: memref<256x128xf32, #tpu.memory_space<vmem>>, %arg4: memref<128x128xbf16, #tpu.memory_space<vmem>>, %arg5: memref<1x128xf32, #tpu.memory_space<vmem>>, %arg6: memref<128x256xbf16, #tpu.memory_space<vmem>>, %arg7: memref<1x256xf32, #tpu.memory_space<vmem>>, %arg8: memref<1x1xf32, #tpu.memory_space<smem>>, %arg9: memref<128x256xbf16, #tpu.memory_space<vmem>>, %arg10: memref<1x256xf32, #tpu.memory_space<vmem>>, %arg11: memref<32x256xf32, #tpu.memory_space<vmem>>, %arg12: memref<32x128xf32, #tpu.memory_space<vmem>>, %arg13: memref<32x128xbf16, #tpu.memory_space<vmem>>) attributes {dimension_semantics = [#tpu.dimension_semantics<parallel>, #tpu.dimension_semantics<arbitrary>], iteration_bounds = array<i64: 2, 1>, scalar_prefetch = 1 : i64, scratch_operands = 2 : i64, tpu.core_type = #tpu.core_type<tc>, window_params = [{pipeline_mode = #tpu.pipeline_mode<synchronous>, transform_indices = @transform_0, window_bounds = array<i64: 256, 128>}, {pipeline_mode = #tpu.pipeline_mode<synchronous>, transform_indices = @transform_1, window_bounds = array<i64: 128, 128>}, {pipeline_mode = #tpu.pipeline_mode<synchronous>, transform_indices = @transform_2, window_bounds = array<i64: 1, 128>}, {pipeline_mode = #tpu.pipeline_mode<synchronous>, transform_indices = @transform_3, window_bounds = array<i64: 128, 256>}, {pipeline_mode = #tpu.pipeline_mode<synchronous>, transform_indices = @transform_4, window_bounds = array<i64: 1, 256>}, {transform_indices = @transform_5, window_bounds = array<i64: 1, 1>}, {transform_indices = @transform_6, window_bounds = array<i64: 128, 256>}, {transform_indices = @transform_7, window_bounds = array<i64: 1, 256>}, {transform_indices = @transform_8, window_bounds = array<i64: 32, 256>}]} {
    %c32_i32 = arith.constant 32 : i32
    %0 = arith.muli %arg0, %c32_i32 : i32
    %c0_i32 = arith.constant 0 : i32
    %1 = arith.cmpi eq, %arg1, %c0_i32 : i32
    %2 = arith.extui %1 : i1 to i32
    %c0_i32_0 = arith.constant 0 : i32
    %3 = arith.cmpi ne, %2, %c0_i32_0 : i32
    scf.if %3 {
      %c0_i32_8 = arith.constant 0 : i32
      %c32_i32_9 = arith.constant 32 : i32
      %11 = arith.addi %c0_i32_8, %c32_i32_9 : i32
      %c1_i32 = arith.constant 1 : i32
      scf.for %arg14 = %c0_i32_8 to %11 step %c1_i32  : i32 {
        %c1_i32_28 = arith.constant 1 : i32
        %39 = arith.muli %arg14, %c1_i32_28 : i32
        %c0_i32_29 = arith.constant 0 : i32
        %40 = arith.addi %c0_i32_29, %39 : i32
        %41 = arith.addi %0, %40 : i32
        %42 = arith.index_cast %41 : i32 to index
        %43 = memref.load %arg2[%42] : memref<64xi32, #tpu.memory_space<smem>>
        %44 = arith.index_cast %43 : i32 to index
        %c0_30 = arith.constant 0 : index
        %45 = vector.load %arg3[%44, %c0_30] : memref<256x128xf32, #tpu.memory_space<vmem>>, vector<1x128xf32>
        %46 = arith.index_cast %40 : i32 to index
        %c0_31 = arith.constant 0 : index
        %47 = vector.load %arg12[%46, %c0_31] : memref<32x128xf32, #tpu.memory_space<vmem>>, vector<1x128xf32>
        tpu.vector_store %arg12[%46, %c0_31], %45 {strides = array<i32>} : memref<32x128xf32, #tpu.memory_space<vmem>>, vector<1x128xf32>,
      }
      %c32_i32_10 = arith.constant 32 : i32
      %c0_11 = arith.constant 0 : index
      %c0_12 = arith.constant 0 : index
      %12 = vector.load %arg12[%c0_11, %c0_12] : memref<32x128xf32, #tpu.memory_space<vmem>>, vector<32x128xf32>
      %13 = arith.truncf %12 : vector<32x128xf32> to vector<32x128xbf16>
      %c0_13 = arith.constant 0 : index
      %c0_14 = arith.constant 0 : index
      %14 = vector.load %arg4[%c0_13, %c0_14] : memref<128x128xbf16, #tpu.memory_space<vmem>>, vector<128x128xbf16>
      %cst_15 = arith.constant dense<0.000000e+00> : vector<32x128xf32>
      %15 = tpu.matmul %13, %14, %cst_15 {dimension_numbers = #tpu.dot_dimension_numbers<[1], [0], [0], [1], [0, 0, 1, 1], [], []>} : vector<32x128xbf16>, vector<128x128xbf16>, vector<32x128xf32> -> vector<32x128xf32>
      %c0_16 = arith.constant 0 : index
      %c0_17 = arith.constant 0 : index
      %16 = vector.load %arg5[%c0_16, %c0_17] : memref<1x128xf32, #tpu.memory_space<vmem>>, vector<1x128xf32>
      %17 = vector.broadcast %16 : vector<1x128xf32> to vector<32x128xf32>
      %18 = arith.addf %15, %17 : vector<32x128xf32>
      %19 = arith.truncf %18 : vector<32x128xf32> to vector<32x128xbf16>
      %c0_18 = arith.constant 0 : index
      %c0_19 = arith.constant 0 : index
      %20 = vector.load %arg6[%c0_18, %c0_19] : memref<128x256xbf16, #tpu.memory_space<vmem>>, vector<128x256xbf16>
      %cst_20 = arith.constant dense<0.000000e+00> : vector<32x256xf32>
      %21 = tpu.matmul %19, %20, %cst_20 {dimension_numbers = #tpu.dot_dimension_numbers<[1], [0], [0], [1], [0, 0, 1, 1], [], []>} : vector<32x128xbf16>, vector<128x256xbf16>, vector<32x256xf32> -> vector<32x256xf32>
      %c0_21 = arith.constant 0 : index
      %c0_22 = arith.constant 0 : index
      %22 = vector.load %arg7[%c0_21, %c0_22] : memref<1x256xf32, #tpu.memory_space<vmem>>, vector<1x256xf32>
      %23 = vector.broadcast %22 : vector<1x256xf32> to vector<32x256xf32>
      %24 = arith.addf %21, %23 : vector<32x256xf32>
      %25 = vector.extract_strided_slice %24 {offsets = [0, 0], sizes = [32, 128], strides = [1, 1]} : vector<32x256xf32> to vector<32x128xf32>
      %26 = vector.extract_strided_slice %24 {offsets = [0, 128], sizes = [32, 128], strides = [1, 1]} : vector<32x256xf32> to vector<32x128xf32>
      %c0_23 = arith.constant 0 : index
      %c0_24 = arith.constant 0 : index
      %27 = memref.load %arg8[%c0_23, %c0_24] : memref<1x1xf32, #tpu.memory_space<smem>>
      %28 = vector.broadcast %27 : f32 to vector<32x128xf32>
      %29 = arith.mulf %28, %25 : vector<32x128xf32>
      %30 = arith.negf %29 : vector<32x128xf32>
      %31 = math.exp %30 : vector<32x128xf32>
      %cst_25 = arith.constant 1.000000e+00 : f32
      %32 = vector.broadcast %cst_25 : f32 to vector<32x128xf32>
      %33 = arith.addf %32, %31 : vector<32x128xf32>
      %34 = arith.divf %32, %33 : vector<32x128xf32>
      %35 = arith.mulf %25, %34 : vector<32x128xf32>
      %36 = arith.mulf %35, %26 : vector<32x128xf32>
      %37 = arith.truncf %36 : vector<32x128xf32> to vector<32x128xbf16>
      %c0_26 = arith.constant 0 : index
      %c0_27 = arith.constant 0 : index
      %38 = vector.load %arg13[%c0_26, %c0_27] : memref<32x128xbf16, #tpu.memory_space<vmem>>, vector<32x128xbf16>
      tpu.vector_store %arg13[%c0_26, %c0_27], %37 {strides = array<i32>} : memref<32x128xbf16, #tpu.memory_space<vmem>>, vector<32x128xbf16>,
    } else {
    }
    %c0 = arith.constant 0 : index
    %c0_1 = arith.constant 0 : index
    %4 = vector.load %arg13[%c0, %c0_1] : memref<32x128xbf16, #tpu.memory_space<vmem>>, vector<32x128xbf16>
    %c0_2 = arith.constant 0 : index
    %c0_3 = arith.constant 0 : index
    %5 = vector.load %arg9[%c0_2, %c0_3] : memref<128x256xbf16, #tpu.memory_space<vmem>>, vector<128x256xbf16>
    %cst = arith.constant dense<0.000000e+00> : vector<32x256xf32>
    %6 = tpu.matmul %4, %5, %cst {dimension_numbers = #tpu.dot_dimension_numbers<[1], [0], [0], [1], [0, 0, 1, 1], [], []>} : vector<32x128xbf16>, vector<128x256xbf16>, vector<32x256xf32> -> vector<32x256xf32>
    %c0_4 = arith.constant 0 : index
    %c0_5 = arith.constant 0 : index
    %7 = vector.load %arg10[%c0_4, %c0_5] : memref<1x256xf32, #tpu.memory_space<vmem>>, vector<1x256xf32>
    %8 = vector.broadcast %7 : vector<1x256xf32> to vector<32x256xf32>
    %9 = arith.addf %6, %8 : vector<32x256xf32>
    %c0_6 = arith.constant 0 : index
    %c0_7 = arith.constant 0 : index
    %10 = vector.load %arg11[%c0_6, %c0_7] : memref<32x256xf32, #tpu.memory_space<vmem>>, vector<32x256xf32>
    tpu.vector_store %arg11[%c0_6, %c0_7], %9 {strides = array<i32>} : memref<32x256xf32, #tpu.memory_space<vmem>>, vector<32x256xf32>,
    return
  }
  func.func @transform_0(%arg0: i32, %arg1: i32, %arg2: memref<64xi32, #tpu.memory_space<smem>>) -> (i32, i32) {
    %c0_i32 = arith.constant 0 : i32
    %c0_i32_0 = arith.constant 0 : i32
    %c0_i32_1 = arith.constant 0 : i32
    return %c0_i32, %c0_i32_0 : i32, i32
  }
  func.func @transform_1(%arg0: i32, %arg1: i32, %arg2: memref<64xi32, #tpu.memory_space<smem>>) -> (i32, i32) {
    %c0_i32 = arith.constant 0 : i32
    %c0_i32_0 = arith.constant 0 : i32
    %c0_i32_1 = arith.constant 0 : i32
    return %c0_i32, %c0_i32_0 : i32, i32
  }
  func.func @transform_2(%arg0: i32, %arg1: i32, %arg2: memref<64xi32, #tpu.memory_space<smem>>) -> (i32, i32) {
    %c0_i32 = arith.constant 0 : i32
    %c0_i32_0 = arith.constant 0 : i32
    %c0_i32_1 = arith.constant 0 : i32
    return %c0_i32, %c0_i32_0 : i32, i32
  }
  func.func @transform_3(%arg0: i32, %arg1: i32, %arg2: memref<64xi32, #tpu.memory_space<smem>>) -> (i32, i32) {
    %c0_i32 = arith.constant 0 : i32
    %c0_i32_0 = arith.constant 0 : i32
    %c0_i32_1 = arith.constant 0 : i32
    return %c0_i32, %c0_i32_0 : i32, i32
  }
  func.func @transform_4(%arg0: i32, %arg1: i32, %arg2: memref<64xi32, #tpu.memory_space<smem>>) -> (i32, i32) {
    %c0_i32 = arith.constant 0 : i32
    %c0_i32_0 = arith.constant 0 : i32
    %c0_i32_1 = arith.constant 0 : i32
    return %c0_i32, %c0_i32_0 : i32, i32
  }
  func.func @transform_5(%arg0: i32, %arg1: i32, %arg2: memref<64xi32, #tpu.memory_space<smem>>) -> (i32, i32) {
    %c0_i32 = arith.constant 0 : i32
    %c0_i32_0 = arith.constant 0 : i32
    %c0_i32_1 = arith.constant 0 : i32
    return %c0_i32, %c0_i32_0 : i32, i32
  }
  func.func @transform_6(%arg0: i32, %arg1: i32, %arg2: memref<64xi32, #tpu.memory_space<smem>>) -> (i32, i32) {
    %c0_i32 = arith.constant 0 : i32
    %c0_i32_0 = arith.constant 0 : i32
    return %c0_i32, %arg1 : i32, i32
  }
  func.func @transform_7(%arg0: i32, %arg1: i32, %arg2: memref<64xi32, #tpu.memory_space<smem>>) -> (i32, i32) {
    %c0_i32 = arith.constant 0 : i32
    %c0_i32_0 = arith.constant 0 : i32
    return %c0_i32, %arg1 : i32, i32
  }
  func.func @transform_8(%arg0: i32, %arg1: i32, %arg2: memref<64xi32, #tpu.memory_space<smem>>) -> (i32, i32) {
    %c0_i32 = arith.constant 0 : i32
    return %arg0, %arg1 : i32, i32
  }
}

</mosaic_0001>

<llo_original>
// kernel: tpu_custom_call.1
$region0: #{tpu_custom_call.1}
  #allocation0 [shape = 'u32[]', space=smem, size = 0x4, offset = 0x4, fixed_abs, tag = 'smem constant byte address 0x4 - core index']
  #allocation1 [shape = 'u32[144,128]{1,0:T(1,128)}', space=vmem, size = 0x12000, scoped, tag = 'internal scratch']
  #allocation2 [shape = 'f32[32,128]{1,0:T(8,128)}', space=vmem, size = 0x4000, scoped, tag = 'scratch operand']
  #allocation3 [shape = 'bf16[32,128]{1,0:T(16,128)(2,1)}', space=vmem, size = 0x2000, scoped, tag = 'scratch operand']
  #allocation4 [shape = 's32[1]{0}', space=sflag, size = 0x4, scoped, tag = 'scoped memory for tpu_custom_call.1']
  #allocation5 [shape = 'u8[512]{0}', space=smem, size = 0x200, scoped, tag = 'prefetched SMEM operand 0']
  #allocation6 [shape = 'f32[1,1]{1,0:T(1,128)S(6)}', space=smem, size = 0x200, scoped, tag = 'scoped memory for tpu_custom_call.1']
  %s0 = inlined_call_operand.vmem [shape: s32[64], index: 0, kind: input, shape index: {}]
  %s1 = inlined_call_operand.hbm [shape: f32[256,128], index: 1, kind: input, shape index: {}]
  %s2 = inlined_call_operand.hbm [shape: bf16[128,128], index: 2, kind: input, shape index: {}]
  %s3 = inlined_call_operand.vmem [shape: f32[1,128], index: 3, kind: input, shape index: {}]
  %s4 = inlined_call_operand.hbm [shape: bf16[128,256], index: 4, kind: input, shape index: {}]
  %s5 = inlined_call_operand.vmem [shape: f32[1,256], index: 5, kind: input, shape index: {}]
  %s6 = inlined_call_operand.<no memory space> [shape: f32[1,1], index: 6, kind: input, shape index: {}]
  %s7 = inlined_call_operand.hbm [shape: bf16[128,256], index: 7, kind: input, shape index: {}]
  %s8 = inlined_call_operand.vmem [shape: f32[1,256], index: 8, kind: input, shape index: {}]
  %s9 = inlined_call_operand.hbm [shape: f32[64,256], index: 9, kind: output, shape index: {}]
  %s10 = sld [smem:[#allocation0]]
  $region92: #{tpu_custom_call.1} parent=0
    _
  %s12 = ssub.s32 1, %s10
  %s13 = scalar_select 0, %s12, %s10
  %s14 = sshll.u32 %s0, 4
  %s15 = int_to_ptr.vmem [resolvable:$true] %s14
  %17 = dma.vmem_to_smem %s15, 16, [#allocation5], [#allocation4]
  %18 = sst [smem:[#allocation6]] %s6
  %19 = dma.done [#allocation4], 16
  %20 = sfence
  $region1: #{tpu_custom_call.1} parent=0
    #allocation7 [shape = 'u8[131072]{0}', space=vmem, size = 0x20000, scoped, tag = 'input window, operand 1, single buffered']
    #allocation8 [shape = 's32[2]{0}', space=sflag, size = 0x8, scoped, tag = 'scoped memory for tpu_custom_call.1']
    #allocation9 [shape = 's32[2]{0}', space=sflag, size = 0x8, scoped, tag = 'scoped memory for tpu_custom_call.1']
    #allocation10 [shape = 'u8[32768]{0}', space=vmem, size = 0x8000, scoped, tag = 'input window, operand 2, single buffered']
    #allocation11 [shape = 's32[1]{0}', space=sflag, size = 0x4, scoped, tag = 'scoped memory for tpu_custom_call.1']
    #allocation12 [shape = 'u8[65536]{0}', space=vmem, size = 0x10000, scoped, tag = 'input window, operand 4, single buffered']
    #allocation13 [shape = 'u8[65536]{0}', space=vmem, size = 0x10000, scoped, tag = 'input window, operand 7, single buffered']
    #allocation14 [shape = 's32[1]{0}', space=sflag, size = 0x4, scoped, tag = 'scoped memory for tpu_custom_call.1']
    #allocation15 [shape = 'u8[65536]{0}', space=vmem, size = 0x10000, scoped, tag = 'output window, operand 0']
    %21 = vsyncpa [#allocation8], 0
    %22 = vsyncpa [#allocation11], 0
    %23 = vsyncpa [#allocation14], 0
    %24 = vsyncpa [#allocation9], 0
    %s25 = scalar_lea.sflag [#allocation9], 1
    %26 = vsyncpa %s25, 0
    loop: start=0, step=1, limit=4
    $region2: #{tpu_custom_call.1} parent=1 // loop_pre_header
      _
    $region3: #{tpu_custom_call.1} parent=1 // loop_header
      %s28 = sphi 0, %s32
      %p29 = scmp.ge.s32.totalorder %s28, 4
      %s35 = sphi 0, %s47
      %s36 = sphi 0, %s43
      %s37 = sphi 0, %s35
      %s38 = sphi 0, %s36
      %s39 = sphi 0, %s37
      %s40 = sphi 0, %s38
      %s48 = sphi 0, %s48
      %s50 = sphi 0, %s48
      %s51 = sphi 0, %s50
      %s65 = sphi 0, %s51
      %s69 = sphi 0, %s69
      %s71 = sphi 0, %s69
      %s72 = sphi 0, %s71
      %s86 = sphi 0, %s72
      %s90 = sphi 0, %s90
      %s92 = sphi 0, %s90
      %s93 = sphi 0, %s92
      %s107 = sphi 0, %s93
      %s111 = sphi 0, %s111
      %s113 = sphi 0, %s111
      %s114 = sphi 0, %s113
      %s128 = sphi 0, %s114
      %s132 = sphi 0, %s132
      %s134 = sphi 0, %s132
      %s135 = sphi 0, %s134
      %s149 = sphi 0, %s135
      %s153 = sphi 0, %s153
      %s155 = sphi 0, %s153
      %s156 = sphi 0, %s155
      %s170 = sphi 0, %s156
      %s176 = sphi 0, %s178
      %s179 = sphi 0, %s176
      %s180 = sphi 0, %s179
      %s196 = sphi 0, %s180
      %s202 = sphi 0, %s204
      %s205 = sphi 0, %s202
      %s206 = sphi 0, %s205
      %s222 = sphi 0, %s206
      %s230 = sphi 0, %s232
      %s233 = sphi 0, %s230
      %s234 = sphi 0, %s233
      %s250 = sphi 0, %s234
    $region4: #{tpu_custom_call.1} parent=1 // loop_header_branch
      %31 = sbr.rel (%p29) target = $region8
    $region5: #{tpu_custom_call.1} parent=1 // loop_body
      %s33 = ssub.s32 %s28, 1
      %s34 = ssub.s32 %s28, 2
      %s41 = sadd.s32 1, %s36
      %p42 = scmp.ge.s32.totalorder %s41, 1
      %s43 = scalar_select %p42, 0, %s41
      %s44 = sadd.s32 1, %s35
      %s45 = scalar_select %p42, %s44, %s35
      %p46 = scmp.ge.s32.totalorder %s45, 2
      %s47 = scalar_select %p46, 0, %s45
      %s49 = sadd.s32 %s48, 1
      %p52 = scmp.eq.s32.totalorder %s28, 1
      %p53 = scmp.ne.s32.totalorder %s48, %s50
      %p54 = scmp.eq.s32.totalorder %s28, 0
      %p55 = por %p53, %p54
      %p56 = scmp.ne.s32.totalorder %s48, %s50
      %p57 = scmp.eq.s32.totalorder %s33, 1
      %p58 = por %p56, %p57
      %p59 = scmp.ne.s32.totalorder %s50, %s51
      %p60 = scmp.eq.s32.totalorder %s33, 0
      %p61 = por %p59, %p60
      %p62 = scmp.ne.s32.totalorder %s50, %s51
      %p63 = scmp.eq.s32.totalorder %s34, 1
      %p64 = por %p62, %p63
      %p66 = scmp.ne.s32.totalorder %s51, %s65
      %p67 = scmp.eq.s32.totalorder %s34, 0
      %p68 = por %p66, %p67
      %s70 = sadd.s32 %s69, 1
      %p73 = scmp.eq.s32.totalorder %s28, 1
      %p74 = scmp.ne.s32.totalorder %s69, %s71
      %p75 = scmp.eq.s32.totalorder %s28, 0
      %p76 = por %p74, %p75
      %p77 = scmp.ne.s32.totalorder %s69, %s71
      %p78 = scmp.eq.s32.totalorder %s33, 1
      %p79 = por %p77, %p78
      %p80 = scmp.ne.s32.totalorder %s71, %s72
      %p81 = scmp.eq.s32.totalorder %s33, 0
      %p82 = por %p80, %p81
      %p83 = scmp.ne.s32.totalorder %s71, %s72
      %p84 = scmp.eq.s32.totalorder %s34, 1
      %p85 = por %p83, %p84
      %p87 = scmp.ne.s32.totalorder %s72, %s86
      %p88 = scmp.eq.s32.totalorder %s34, 0
      %p89 = por %p87, %p88
      %s91 = sadd.s32 %s90, 1
      %p94 = scmp.eq.s32.totalorder %s28, 1
      %p95 = scmp.ne.s32.totalorder %s90, %s92
      %p96 = scmp.eq.s32.totalorder %s28, 0
      %p97 = por %p95, %p96
      %p98 = scmp.ne.s32.totalorder %s90, %s92
      %p99 = scmp.eq.s32.totalorder %s33, 1
      %p100 = por %p98, %p99
      %p101 = scmp.ne.s32.totalorder %s92, %s93
      %p102 = scmp.eq.s32.totalorder %s33, 0
      %p103 = por %p101, %p102
      %p104 = scmp.ne.s32.totalorder %s92, %s93
      %p105 = scmp.eq.s32.totalorder %s34, 1
      %p106 = por %p104, %p105
      %p108 = scmp.ne.s32.totalorder %s93, %s107
      %p109 = scmp.eq.s32.totalorder %s34, 0
      %p110 = por %p108, %p109
      %s112 = sadd.s32 %s111, 1
      %p115 = scmp.eq.s32.totalorder %s28, 1
      %p116 = scmp.ne.s32.totalorder %s111, %s113
      %p117 = scmp.eq.s32.totalorder %s28, 0
      %p118 = por %p116, %p117
      %p119 = scmp.ne.s32.totalorder %s111, %s113
      %p120 = scmp.eq.s32.totalorder %s33, 1
      %p121 = por %p119, %p120
      %p122 = scmp.ne.s32.totalorder %s113, %s114
      %p123 = scmp.eq.s32.totalorder %s33, 0
      %p124 = por %p122, %p123
      %p125 = scmp.ne.s32.totalorder %s113, %s114
      %p126 = scmp.eq.s32.totalorder %s34, 1
      %p127 = por %p125, %p126
      %p129 = scmp.ne.s32.totalorder %s114, %s128
      %p130 = scmp.eq.s32.totalorder %s34, 0
      %p131 = por %p129, %p130
      %s133 = sadd.s32 %s132, 1
      %p136 = scmp.eq.s32.totalorder %s28, 1
      %p137 = scmp.ne.s32.totalorder %s132, %s134
      %p138 = scmp.eq.s32.totalorder %s28, 0
      %p139 = por %p137, %p138
      %p140 = scmp.ne.s32.totalorder %s132, %s134
      %p141 = scmp.eq.s32.totalorder %s33, 1
      %p142 = por %p140, %p141
      %p143 = scmp.ne.s32.totalorder %s134, %s135
      %p144 = scmp.eq.s32.totalorder %s33, 0
      %p145 = por %p143, %p144
      %p146 = scmp.ne.s32.totalorder %s134, %s135
      %p147 = scmp.eq.s32.totalorder %s34, 1
      %p148 = por %p146, %p147
      %p150 = scmp.ne.s32.totalorder %s135, %s149
      %p151 = scmp.eq.s32.totalorder %s34, 0
      %p152 = por %p150, %p151
      %s154 = sadd.s32 %s153, 1
      %p157 = scmp.eq.s32.totalorder %s28, 1
      %p158 = scmp.ne.s32.totalorder %s153, %s155
      %p159 = scmp.eq.s32.totalorder %s28, 0
      %p160 = por %p158, %p159
      %p161 = scmp.ne.s32.totalorder %s153, %s155
      %p162 = scmp.eq.s32.totalorder %s33, 1
      %p163 = por %p161, %p162
      %p164 = scmp.ne.s32.totalorder %s155, %s156
      %p165 = scmp.eq.s32.totalorder %s33, 0
      %p166 = por %p164, %p165
      %p167 = scmp.ne.s32.totalorder %s155, %s156
      %p168 = scmp.eq.s32.totalorder %s34, 1
      %p169 = por %p167, %p168
      %p171 = scmp.ne.s32.totalorder %s156, %s170
      %p172 = scmp.eq.s32.totalorder %s34, 0
      %p173 = por %p171, %p172
      %s174 = ssub.s32 %s36, %s43
      %p175 = scmp.eq.s32.totalorder %s174, 0
      %s177 = sadd.s32 %s176, 1
      %s178 = scalar_select %p175, %s176, %s177
      %p181 = pneg %p175
      %p182 = scmp.eq.s32.totalorder %s28, 1
      %p183 = por %p181, %p182
      %p184 = scmp.ne.s32.totalorder %s176, %s179
      %p185 = scmp.eq.s32.totalorder %s28, 0
      %p186 = por %p184, %p185
      %p187 = scmp.ne.s32.totalorder %s176, %s179
      %p188 = scmp.eq.s32.totalorder %s33, 1
      %p189 = por %p187, %p188
      %p190 = scmp.ne.s32.totalorder %s179, %s180
      %p191 = scmp.eq.s32.totalorder %s33, 0
      %p192 = por %p190, %p191
      %p193 = scmp.ne.s32.totalorder %s179, %s180
      %p194 = scmp.eq.s32.totalorder %s34, 1
      %p195 = por %p193, %p194
      %p197 = scmp.ne.s32.totalorder %s180, %s196
      %p198 = scmp.eq.s32.totalorder %s34, 0
      %p199 = por %p197, %p198
      %s200 = ssub.s32 %s36, %s43
      %p201 = scmp.eq.s32.totalorder %s200, 0
      %s203 = sadd.s32 %s202, 1
      %s204 = scalar_select %p201, %s202, %s203
      %p207 = pneg %p201
      %p208 = scmp.eq.s32.totalorder %s28, 1
      %p209 = por %p207, %p208
      %p210 = scmp.ne.s32.totalorder %s202, %s205
      %p211 = scmp.eq.s32.totalorder %s28, 0
      %p212 = por %p210, %p211
      %p213 = scmp.ne.s32.totalorder %s202, %s205
      %p214 = scmp.eq.s32.totalorder %s33, 1
      %p215 = por %p213, %p214
      %p216 = scmp.ne.s32.totalorder %s205, %s206
      %p217 = scmp.eq.s32.totalorder %s33, 0
      %p218 = por %p216, %p217
      %p219 = scmp.ne.s32.totalorder %s205, %s206
      %p220 = scmp.eq.s32.totalorder %s34, 1
      %p221 = por %p219, %p220
      %p223 = scmp.ne.s32.totalorder %s206, %s222
      %p224 = scmp.eq.s32.totalorder %s34, 0
      %p225 = por %p223, %p224
      %s226 = ssub.s32 %s35, %s47
      %s227 = ssub.s32 %s36, %s43
      %s228 = sor.u32 %s226, %s227
      %p229 = scmp.eq.s32.totalorder %s228, 0
      %s231 = sadd.s32 %s230, 1
      %s232 = scalar_select %p229, %s230, %s231
      %p235 = pneg %p229
      %p236 = scmp.eq.s32.totalorder %s28, 1
      %p237 = por %p235, %p236
      %p238 = scmp.ne.s32.totalorder %s230, %s233
      %p239 = scmp.eq.s32.totalorder %s28, 0
      %p240 = por %p238, %p239
      %p241 = scmp.ne.s32.totalorder %s230, %s233
      %p242 = scmp.eq.s32.totalorder %s33, 1
      %p243 = por %p241, %p242
      %p244 = scmp.ne.s32.totalorder %s233, %s234
      %p245 = scmp.eq.s32.totalorder %s33, 0
      %p246 = por %p244, %p245
      %p247 = scmp.ne.s32.totalorder %s233, %s234
      %p248 = scmp.eq.s32.totalorder %s34, 1
      %p249 = por %p247, %p248
      %p251 = scmp.ne.s32.totalorder %s234, %s250
      %p252 = scmp.eq.s32.totalorder %s34, 0
      %p253 = por %p251, %p252
      %p254 = scmp.le.s32.totalorder 1, %s28
      %p255 = scmp.lt.s32.totalorder %s28, 3
      %p256 = pnand %p254, %p255
      %p257 = pneg %p256
      // Predicated region
      $region9: #{tpu_custom_call.1} parent=5 // pred_check
        _
      $region10: #{tpu_custom_call.1} parent=5 // pred_check_branch
        %259 = sbr.rel (%p256) target = $region12
      $region11: #{tpu_custom_call.1} parent=5 // pred_region
        %s260 = ssub.s32 %s28, 1
        // Predicated region
        $region13: #{tpu_custom_call.1} parent=11 // pred_check
          %p261 = pneg %p61
        $region14: #{tpu_custom_call.1} parent=11 // pred_check_branch
          %263 = sbr.rel (%p261) target = $region16
        $region15: #{tpu_custom_call.1} parent=11 // pred_region
          %s265 = ssub.s32 4096, 4096
          %266 = vsyncadd [#allocation8], %s265
          %s267 = sshll.u32 [#allocation7], 4
          %s268 = int_to_ptr.vmem [resolvable:$true] %s267
          %273 = dma.hbm_to_vmem [thread:$0]  %s1, 4096, %s268, [#allocation8], 128, 128, 8
        $region16: #{tpu_custom_call.1} parent=11 // pred_fallthru
          _
        // Predicated region
        $region17: #{tpu_custom_call.1} parent=11 // pred_check
          %p274 = pneg %p82
        $region18: #{tpu_custom_call.1} parent=11 // pred_check_branch
          %276 = sbr.rel (%p274) target = $region20
        $region19: #{tpu_custom_call.1} parent=11 // pred_region
          %s278 = ssub.s32 1024, 1024
          %279 = vsyncadd [#allocation11], %s278
          %s280 = sshll.u32 [#allocation10], 4
          %s281 = int_to_ptr.vmem [resolvable:$true] %s280
          %286 = dma.hbm_to_vmem [thread:$0]  %s2, 1024, %s281, [#allocation11], 64, 64, 4
        $region20: #{tpu_custom_call.1} parent=11 // pred_fallthru
          _
        // Predicated region
        $region21: #{tpu_custom_call.1} parent=11 // pred_check
          %p287 = pneg %p103
        $region22: #{tpu_custom_call.1} parent=11 // pred_check_branch
          %289 = sbr.rel (%p287) target = $region24
        $region23: #{tpu_custom_call.1} parent=11 // pred_region
          _
        $region24: #{tpu_custom_call.1} parent=11 // pred_fallthru
          _
        // Predicated region
        $region25: #{tpu_custom_call.1} parent=11 // pred_check
          %p290 = pneg %p124
        $region26: #{tpu_custom_call.1} parent=11 // pred_check_branch
          %292 = sbr.rel (%p290) target = $region28
        $region27: #{tpu_custom_call.1} parent=11 // pred_region
          %s294 = ssub.s32 2048, 2048
          %295 = vsyncadd [#allocation11], %s294
          %s296 = sshll.u32 [#allocation12], 4
          %s297 = int_to_ptr.vmem [resolvable:$true] %s296
          %302 = dma.hbm_to_vmem [thread:$0]  %s4, 2048, %s297, [#allocation11], 128, 128, 8
        $region28: #{tpu_custom_call.1} parent=11 // pred_fallthru
          _
        // Predicated region
        $region29: #{tpu_custom_call.1} parent=11 // pred_check
          %p303 = pneg %p145
        $region30: #{tpu_custom_call.1} parent=11 // pred_check_branch
          %305 = sbr.rel (%p303) target = $region32
        $region31: #{tpu_custom_call.1} parent=11 // pred_region
          _
        $region32: #{tpu_custom_call.1} parent=11 // pred_fallthru
          _
        // Predicated region
        $region33: #{tpu_custom_call.1} parent=11 // pred_check
          %p306 = pneg %p166
        $region34: #{tpu_custom_call.1} parent=11 // pred_check_branch
          %308 = sbr.rel (%p306) target = $region36
        $region35: #{tpu_custom_call.1} parent=11 // pred_region
          _
        $region36: #{tpu_custom_call.1} parent=11 // pred_fallthru
          _
        // Predicated region
        $region37: #{tpu_custom_call.1} parent=11 // pred_check
          %p309 = pneg %p192
        $region38: #{tpu_custom_call.1} parent=11 // pred_check_branch
          %311 = sbr.rel (%p309) target = $region40
        $region39: #{tpu_custom_call.1} parent=11 // pred_region
          %s312 = smul.u32 2, %s38
          %s314 = ssub.s32 2048, 2048
          %315 = vsyncadd [#allocation14], %s314
          %s316 = smul.addr %s312, 64
          %s317 = scalar_lea.hbm %s7, %s316
          %s318 = sshll.u32 [#allocation13], 4
          %s319 = int_to_ptr.vmem [resolvable:$true] %s318
          %324 = dma.hbm_to_vmem [thread:$0]  %s317, 2048, %s319, [#allocation14], 128, 128, 8
        $region40: #{tpu_custom_call.1} parent=11 // pred_fallthru
          _
        // Predicated region
        $region41: #{tpu_custom_call.1} parent=11 // pred_check
          %p325 = pneg %p218
        $region42: #{tpu_custom_call.1} parent=11 // pred_check_branch
          %327 = sbr.rel (%p325) target = $region44
        $region43: #{tpu_custom_call.1} parent=11 // pred_region
          %s328 = smul.u32 2, %s38
          %p329 = scmp.lt.s32.totalorder %s328, 1
          %s330 = scalar_select %p329, %s328, 1
          %s331 = scalar_lea.vmem %s8, %s330
          %s332 = smul.u32 2, %s38
        $region44: #{tpu_custom_call.1} parent=11 // pred_fallthru
          _
      $region12: #{tpu_custom_call.1} parent=5 // pred_fallthru
        _
      %p333 = scmp.lt.s32.totalorder %s28, 2
      // Predicated region
      $region45: #{tpu_custom_call.1} parent=5 // pred_check
        %p334 = pneg %p333
      $region46: #{tpu_custom_call.1} parent=5 // pred_check_branch
        %336 = sbr.rel (%p334) target = $region48
      $region47: #{tpu_custom_call.1} parent=5 // pred_region
        _
      $region48: #{tpu_custom_call.1} parent=5 // pred_fallthru
        _
      %p337 = scmp.le.s32.totalorder 1, %s28
      %p338 = scmp.lt.s32.totalorder %s28, 3
      %p339 = pnand %p337, %p338
      %p340 = pneg %p339
      // Predicated region
      $region49: #{tpu_custom_call.1} parent=5 // pred_check
        _
      $region50: #{tpu_custom_call.1} parent=5 // pred_check_branch
        %342 = sbr.rel (%p339) target = $region52
      $region51: #{tpu_custom_call.1} parent=5 // pred_region
        %s343 = ssub.s32 %s28, 1
        // Predicated region
        $region53: #{tpu_custom_call.1} parent=51 // pred_check
          %p344 = pneg %p61
        $region54: #{tpu_custom_call.1} parent=51 // pred_check_branch
          %346 = sbr.rel (%p344) target = $region56
        $region55: #{tpu_custom_call.1} parent=51 // pred_region
          %347 = dma.done [#allocation8], 4096
        $region56: #{tpu_custom_call.1} parent=51 // pred_fallthru
          _
        // Predicated region
        $region57: #{tpu_custom_call.1} parent=51 // pred_check
          %p348 = pneg %p82
        $region58: #{tpu_custom_call.1} parent=51 // pred_check_branch
          %350 = sbr.rel (%p348) target = $region60
        $region59: #{tpu_custom_call.1} parent=51 // pred_region
          %351 = dma.done [#allocation11], 1024
        $region60: #{tpu_custom_call.1} parent=51 // pred_fallthru
          _
        // Predicated region
        $region61: #{tpu_custom_call.1} parent=51 // pred_check
          %p352 = pneg %p124
        $region62: #{tpu_custom_call.1} parent=51 // pred_check_branch
          %354 = sbr.rel (%p352) target = $region64
        $region63: #{tpu_custom_call.1} parent=51 // pred_region
          %355 = dma.done [#allocation11], 2048
        $region64: #{tpu_custom_call.1} parent=51 // pred_fallthru
          _
        // Predicated region
        $region65: #{tpu_custom_call.1} parent=51 // pred_check
          %p356 = pneg %p192
        $region66: #{tpu_custom_call.1} parent=51 // pred_check_branch
          %358 = sbr.rel (%p356) target = $region68
        $region67: #{tpu_custom_call.1} parent=51 // pred_region
          %359 = dma.done [#allocation14], 2048
        $region68: #{tpu_custom_call.1} parent=51 // pred_fallthru
          _
        %p360 = pneg %p61
        %p361 = pneg %p58
        %p362 = pneg %p82
        %p363 = pneg %p79
        %p364 = pneg %p103
        %p365 = pneg %p100
        %p366 = pneg %p124
        %p367 = pneg %p121
        %p368 = pneg %p145
        %p369 = pneg %p142
        %p370 = pneg %p166
        %p371 = pneg %p163
        %p372 = pneg %p192
        %p373 = pneg %p189
        %s374 = smul.u32 2, %s38
        %p375 = scmp.lt.s32.totalorder %s374, 1
        %s376 = scalar_select %p375, %s374, 1
        %s377 = scalar_lea.vmem %s8, %s376
        %p378 = pneg %p218
        %p379 = pneg %p215
        %p380 = pneg %p246
        %p381 = pneg %p243
        %s382 = sand.u32 %s233, 1
        %s383 = scalar_lea.sflag [#allocation9], %s382
        %s384 = sand.u32 %s233, 1
        %s385 = smul.addr %s384, 64
        %s386 = scalar_lea.vmem [#allocation15], %s385
        %s387 = smul.u32 2, %s38
        %s388 = smul.u32 2, %s38
        %p389 = scmp.lt.s32.totalorder %s388, 1
        %s390 = scalar_select %p389, %s388, 1
        %s391 = scalar_lea.vmem %s8, %s390
        %s392 = smul.u32 2, %s38
        %s393 = smul.u32 4, %s37
        %s394 = smul.u32 2, %s38
        %s396 = smul.u32 %s37, 32
        %p397 = scmp.eq.s32.totalorder %s38, 0
        // Predicated region
        $region69: #{tpu_custom_call.1} parent=51 // pred_check
          %p398 = pneg %p397
        $region70: #{tpu_custom_call.1} parent=51 // pred_check_branch
          %400 = sbr.rel (%p398) target = $region72
        $region71: #{tpu_custom_call.1} parent=51 // pred_region
          loop: start=0, step=1, limit=32
          $region73: #{tpu_custom_call.1} parent=71 // loop_pre_header
            _
          $region74: #{tpu_custom_call.1} parent=71 // loop_header
            %s402 = sphi 0, %s406
            %p403 = scmp.ge.s32.totalorder %s402, 32
          $region75: #{tpu_custom_call.1} parent=71 // loop_header_branch
            %405 = sbr.rel (%p403) target = $region79
          $region76: #{tpu_custom_call.1} parent=71 // loop_body
            %s407 = sadd.s32 %s396, %s402
            %s408 = sld [smem:[#allocation5 + %s407]]
            %s409 = scalar_lea.vmem [#allocation7], %s408
            %v410 = vld [vmem:[%s409] sm:$0x1]
            %s411 = scalar_lea.vmem [#allocation2], %s402
            %412 = vst [vmem:[%s411] sm:$0x1] %v410
          $region77: #{tpu_custom_call.1} parent=71 // loop_footer
            %s406 = sadd.s32 1, %s402
          $region78: #{tpu_custom_call.1} parent=71 // loop_footer_branch
            %401 = sbr.rel target = $region74
          $region79: #{tpu_custom_call.1} parent=71 // loop_exit
            _
          %v413 = vld [vmem:[#allocation2] sm:$0xff]
          %v414 = vld [vmem:[#allocation2 + $0x8] sm:$0xff]
          %v415 = vld [vmem:[#allocation2 + $0x10] sm:$0xff]
          %v416 = vld [vmem:[#allocation2 + $0x18] sm:$0xff]
          %v417 = vpack.c.bf16 %v414, %v413
          %v418 = vpack.c.bf16 %v416, %v415
          %v419 = vld [vmem:[#allocation10] sm:$0xf]
          %v420 = vld [vmem:[#allocation10 + $0x4] sm:$0xf]
          %v421 = vld [vmem:[#allocation10 + $0x8] sm:$0xf]
          %v422 = vld [vmem:[#allocation10 + $0xc] sm:$0xf]
          %v423 = vld [vmem:[#allocation10 + $0x10] sm:$0xf]
          %v424 = vld [vmem:[#allocation10 + $0x14] sm:$0xf]
          %v425 = vld [vmem:[#allocation10 + $0x18] sm:$0xf]
          %v426 = vld [vmem:[#allocation10 + $0x1c] sm:$0xf]
          %v427 = vld [vmem:[#allocation10 + $0x20] sm:$0xf]
          %v428 = vld [vmem:[#allocation10 + $0x24] sm:$0xf]
          %v429 = vld [vmem:[#allocation10 + $0x28] sm:$0xf]
          %v430 = vld [vmem:[#allocation10 + $0x2c] sm:$0xf]
          %v431 = vld [vmem:[#allocation10 + $0x30] sm:$0xf]
          %v432 = vld [vmem:[#allocation10 + $0x34] sm:$0xf]
          %v433 = vld [vmem:[#allocation10 + $0x38] sm:$0xf]
          %v434 = vld [vmem:[#allocation10 + $0x3c] sm:$0xf]
          %v435 = vld [vmem:[%s3] sm:$0x1]
          %v437 = vlaneseq
          %v438 = vshrl.u32 %v437, 7
          %v439 = vsub.s32 0, %v438
          %v440 = vrot.slane %v435, %v439
          %v458 = vunpack.c.l.b16 %v419
          %v459 = vunpack.c.l.b16 %v420
          %v460 = vunpack.c.l.b16 %v421
          %v461 = vunpack.c.l.b16 %v422
          %v462 = vunpack.c.l.b16 %v423
          %v463 = vunpack.c.l.b16 %v424
          %v464 = vunpack.c.l.b16 %v425
          %v465 = vunpack.c.l.b16 %v426
          %v466 = vunpack.c.l.b16 %v427
          %v467 = vunpack.c.l.b16 %v428
          %v468 = vunpack.c.l.b16 %v429
          %v469 = vunpack.c.l.b16 %v430
          %v470 = vunpack.c.l.b16 %v431
          %v471 = vunpack.c.l.b16 %v432
          %v472 = vunpack.c.l.b16 %v433
          %v473 = vunpack.c.l.b16 %v434
          %v474 = vpack.c.b16 %v459, %v458
          %v475 = vpack.c.b16 %v461, %v460
          %v476 = vpack.c.b16 %v463, %v462
          %v477 = vpack.c.b16 %v465, %v464
          %v478 = vpack.c.b16 %v467, %v466
          %v479 = vpack.c.b16 %v469, %v468
          %v480 = vpack.c.b16 %v471, %v470
          %v481 = vpack.c.b16 %v473, %v472
          %490 = vmatprep.subr.bf16.mxu0 0
          %491 = vmatpush1.bf16.msra.mxu0 %v474
          %492 = vmatprep.subr.bf16.mxu0 0
          %493 = vmatpush1.bf16.msra.mxu0 %v475
          %494 = vmatprep.subr.bf16.mxu0 0
          %495 = vmatpush1.bf16.msra.mxu0 %v476
          %496 = vmatprep.subr.bf16.mxu0 0
          %497 = vmatpush1.bf16.msra.mxu0 %v477
          %498 = vmatprep.subr.bf16.mxu0 0
          %499 = vmatpush1.bf16.msra.mxu0 %v478
          %500 = vmatprep.subr.bf16.mxu0 0
          %501 = vmatpush1.bf16.msra.mxu0 %v479
          %502 = vmatprep.subr.bf16.mxu0 0
          %503 = vmatpush1.bf16.msra.mxu0 %v480
          %504 = vmatprep.subr.bf16.mxu0 0
          %505 = vmatpush1.bf16.msra.mxu0 %v481
          %506 = vmatprep.subr.bf16.mxu0 0
          %507 = vmatpush1.bf16.msra.mxu0 0
          %508 = vmatprep.subr.bf16.mxu0 0
          %509 = vmatpush1.bf16.msra.mxu0 0
          %510 = vmatprep.subr.bf16.mxu0 0
          %511 = vmatpush1.bf16.msra.mxu0 0
          %512 = vmatprep.subr.bf16.mxu0 0
          %513 = vmatpush1.bf16.msra.mxu0 0
          %514 = vmatprep.subr.bf16.mxu0 0
          %515 = vmatpush1.bf16.msra.mxu0 0
          %516 = vmatprep.subr.bf16.mxu0 0
          %517 = vmatpush1.bf16.msra.mxu0 0
          %518 = vmatprep.subr.bf16.mxu0 0
          %519 = vmatpush1.bf16.msra.mxu0 0
          %520 = vmatprep.subr.bf16.mxu0 0
          %521 = vmatpush1.bf16.msra.mxu0 0
          %522 = vmatprep.mubr.bf16.mxu0 0
          %523 = vmatmul.mubr.bf16.gmra.mrb[0].mxu0 %v417
          %v524 = vpop.f32.mrb[0].mxu0
          %v525 = vadd.f32 %v440, %v524
          %v526 = vpop.f32.mrb[0].mxu0
          %v527 = vpop.f32.mrb[0].mxu0
          %v528 = vadd.f32 %v440, %v527
          %v529 = vpop.f32.mrb[0].mxu0
          %530 = vmatprep.mubr.bf16.mxu0 0
          %531 = vmatmul.mubr.bf16.gmra.mrb[0].mxu0 %v418
          %v532 = vpop.f32.mrb[0].mxu0
          %v533 = vadd.f32 %v440, %v532
          %v534 = vpop.f32.mrb[0].mxu0
          %v535 = vpop.f32.mrb[0].mxu0
          %v536 = vadd.f32 %v440, %v535
          %v537 = vpop.f32.mrb[0].mxu0
          %538 = vdwg.mxu0
          %v539 = vpack.c.bf16 %v528, %v525
          %v540 = vpack.c.bf16 %v536, %v533
          %v541 = vld [vmem:[#allocation12] sm:$0xff]
          %v542 = vld [vmem:[#allocation12 + $0x8] sm:$0xff]
          %v543 = vld [vmem:[#allocation12 + $0x10] sm:$0xff]
          %v544 = vld [vmem:[#allocation12 + $0x18] sm:$0xff]
          %v545 = vld [vmem:[#allocation12 + $0x20] sm:$0xff]
          %v546 = vld [vmem:[#allocation12 + $0x28] sm:$0xff]
          %v547 = vld [vmem:[#allocation12 + $0x30] sm:$0xff]
          %v548 = vld [vmem:[#allocation12 + $0x38] sm:$0xff]
          %v549 = vld [vmem:[#allocation12 + $0x40] sm:$0xff]
          %v550 = vld [vmem:[#allocation12 + $0x48] sm:$0xff]
          %v551 = vld [vmem:[#allocation12 + $0x50] sm:$0xff]
          %v552 = vld [vmem:[#allocation12 + $0x58] sm:$0xff]
          %v553 = vld [vmem:[#allocation12 + $0x60] sm:$0xff]
          %v554 = vld [vmem:[#allocation12 + $0x68] sm:$0xff]
          %v555 = vld [vmem:[#allocation12 + $0x70] sm:$0xff]
          %v556 = vld [vmem:[#allocation12 + $0x78] sm:$0xff]
          %v557 = vld [vmem:[%s5] sm:$0x3]
          %v559 = vlaneseq
          %v560 = vshrl.u32 %v559, 7
          %v561 = vsub.s32 0, %v560
          %v562 = vrot.slane %v557, %v561
          %v563 = vlaneseq
          %v564 = vshrl.u32 %v563, 7
          %v565 = vsub.s32 1, %v564
          %v566 = vrot.slane %v557, %v565
          %v585 = vunpack.c.l.b16 %v541
          %v586 = vunpack.c.h.b16 %v541
          %v587 = vunpack.c.l.b16 %v542
          %v588 = vunpack.c.h.b16 %v542
          %v589 = vunpack.c.l.b16 %v543
          %v590 = vunpack.c.h.b16 %v543
          %v591 = vunpack.c.l.b16 %v544
          %v592 = vunpack.c.h.b16 %v544
          %v593 = vunpack.c.l.b16 %v545
          %v594 = vunpack.c.h.b16 %v545
          %v595 = vunpack.c.l.b16 %v546
          %v596 = vunpack.c.h.b16 %v546
          %v597 = vunpack.c.l.b16 %v547
          %v598 = vunpack.c.h.b16 %v547
          %v599 = vunpack.c.l.b16 %v548
          %v600 = vunpack.c.h.b16 %v548
          %v601 = vunpack.c.l.b16 %v549
          %v602 = vunpack.c.h.b16 %v549
          %v603 = vunpack.c.l.b16 %v550
          %v604 = vunpack.c.h.b16 %v550
          %v605 = vunpack.c.l.b16 %v551
          %v606 = vunpack.c.h.b16 %v551
          %v607 = vunpack.c.l.b16 %v552
          %v608 = vunpack.c.h.b16 %v552
          %v609 = vunpack.c.l.b16 %v553
          %v610 = vunpack.c.h.b16 %v553
          %v611 = vunpack.c.l.b16 %v554
          %v612 = vunpack.c.h.b16 %v554
          %v613 = vunpack.c.l.b16 %v555
          %v614 = vunpack.c.h.b16 %v555
          %v615 = vunpack.c.l.b16 %v556
          %v616 = vunpack.c.h.b16 %v556
          %v617 = vpack.c.b16 %v587, %v585
          %v618 = vpack.c.b16 %v588, %v586
          %v619 = vpack.c.b16 %v591, %v589
          %v620 = vpack.c.b16 %v592, %v590
          %v621 = vpack.c.b16 %v595, %v593
          %v622 = vpack.c.b16 %v596, %v594
          %v623 = vpack.c.b16 %v599, %v597
          %v624 = vpack.c.b16 %v600, %v598
          %v625 = vpack.c.b16 %v603, %v601
          %v626 = vpack.c.b16 %v604, %v602
          %v627 = vpack.c.b16 %v607, %v605
          %v628 = vpack.c.b16 %v608, %v606
          %v629 = vpack.c.b16 %v611, %v609
          %v630 = vpack.c.b16 %v612, %v610
          %v631 = vpack.c.b16 %v615, %v613
          %v632 = vpack.c.b16 %v616, %v614
          %649 = vmatprep.subr.bf16.mxu0 %v618
          %650 = vmatpush1.bf16.msra.mxu0 %v617
          %651 = vmatprep.subr.bf16.mxu0 %v620
          %652 = vmatpush1.bf16.msra.mxu0 %v619
          %653 = vmatprep.subr.bf16.mxu0 %v622
          %654 = vmatpush1.bf16.msra.mxu0 %v621
          %655 = vmatprep.subr.bf16.mxu0 %v624
          %656 = vmatpush1.bf16.msra.mxu0 %v623
          %657 = vmatprep.subr.bf16.mxu0 %v626
          %658 = vmatpush1.bf16.msra.mxu0 %v625
          %659 = vmatprep.subr.bf16.mxu0 %v628
          %660 = vmatpush1.bf16.msra.mxu0 %v627
          %661 = vmatprep.subr.bf16.mxu0 %v630
          %662 = vmatpush1.bf16.msra.mxu0 %v629
          %663 = vmatprep.subr.bf16.mxu0 %v632
          %664 = vmatpush1.bf16.msra.mxu0 %v631
          %665 = vmatprep.subr.bf16.mxu0 0
          %666 = vmatpush1.bf16.msra.mxu0 0
          %667 = vmatprep.subr.bf16.mxu0 0
          %668 = vmatpush1.bf16.msra.mxu0 0
          %669 = vmatprep.subr.bf16.mxu0 0
          %670 = vmatpush1.bf16.msra.mxu0 0
          %671 = vmatprep.subr.bf16.mxu0 0
          %672 = vmatpush1.bf16.msra.mxu0 0
          %673 = vmatprep.subr.bf16.mxu0 0
          %674 = vmatpush1.bf16.msra.mxu0 0
          %675 = vmatprep.subr.bf16.mxu0 0
          %676 = vmatpush1.bf16.msra.mxu0 0
          %677 = vmatprep.subr.bf16.mxu0 0
          %678 = vmatpush1.bf16.msra.mxu0 0
          %679 = vmatprep.subr.bf16.mxu0 0
          %680 = vmatpush1.bf16.msra.mxu0 0
          %681 = vmatprep.mubr.bf16.mxu0 0
          %682 = vmatmul.mubr.bf16.gmra.mrb[0].mxu0 %v539
          %v683 = vpop.f32.mrb[0].mxu0
          %v684 = vadd.f32 %v562, %v683
          %v685 = vpop.f32.mrb[0].mxu0
          %v686 = vadd.f32 %v566, %v685
          %v687 = vpop.f32.mrb[0].mxu0
          %v688 = vadd.f32 %v562, %v687
          %v689 = vpop.f32.mrb[0].mxu0
          %v690 = vadd.f32 %v566, %v689
          %691 = vmatprep.mubr.bf16.mxu0 0
          %692 = vmatmul.mubr.bf16.gmra.mrb[0].mxu0 %v540
          %v693 = vpop.f32.mrb[0].mxu0
          %v694 = vadd.f32 %v562, %v693
          %v695 = vpop.f32.mrb[0].mxu0
          %v696 = vadd.f32 %v566, %v695
          %v697 = vpop.f32.mrb[0].mxu0
          %v698 = vadd.f32 %v562, %v697
          %v699 = vpop.f32.mrb[0].mxu0
          %v700 = vadd.f32 %v566, %v699
          %701 = vdwg.mxu0
          %s702 = sld [smem:[#allocation6]]
          %v703 = vstv %s702
          %v704 = vmul.f32 %v703, %v684
          %v705 = vmul.f32 %v703, %v688
          %v706 = vmul.f32 %v703, %v694
          %v707 = vmul.f32 %v703, %v698
          %v708 = vxor.u32 %v704, 2147483648
          %v709 = vxor.u32 %v705, 2147483648
          %v710 = vxor.u32 %v706, 2147483648
          %v711 = vxor.u32 %v707, 2147483648
          %v712 = vmul.f32 %v708, 1.442695
          %v713 = vpow.pop %v712
          %v714 = vmul.f32 %v709, 1.442695
          %v715 = vpow.pop %v714
          %v716 = vmul.f32 %v710, 1.442695
          %v717 = vpow.pop %v716
          %v718 = vmul.f32 %v711, 1.442695
          %v719 = vpow.pop %v718
          %v720 = vadd.f32 %v713, 1.0
          %v721 = vadd.f32 %v715, 1.0
          %v722 = vadd.f32 %v717, 1.0
          %v723 = vadd.f32 %v719, 1.0
          %v724 = vrcp.pop %v720
          %v725 = vmul.f32 1.0, %v724
          %v726 = vrcp.pop %v721
          %v727 = vmul.f32 1.0, %v726
          %v728 = vrcp.pop %v722
          %v729 = vmul.f32 1.0, %v728
          %v730 = vrcp.pop %v723
          %v731 = vmul.f32 1.0, %v730
          %v732 = vmul.f32 %v684, %v725
          %v733 = vmul.f32 %v688, %v727
          %v734 = vmul.f32 %v694, %v729
          %v735 = vmul.f32 %v698, %v731
          %v736 = vmul.f32 %v732, %v686
          %v737 = vmul.f32 %v733, %v690
          %v738 = vmul.f32 %v734, %v696
          %v739 = vmul.f32 %v735, %v700
          %v740 = vpack.c.bf16 %v737, %v736
          %v741 = vpack.c.bf16 %v739, %v738
          %742 = vst [vmem:[#allocation3] sm:$0xff] %v740
          %743 = vst [vmem:[#allocation3 + $0x8] sm:$0xff] %v741
        $region72: #{tpu_custom_call.1} parent=51 // pred_fallthru
          _
        %v744 = vld [vmem:[#allocation3] sm:$0xff]
        %v745 = vld [vmem:[#allocation3 + $0x8] sm:$0xff]
        %v746 = vld [vmem:[#allocation13] sm:$0xff]
        %v747 = vld [vmem:[#allocation13 + $0x8] sm:$0xff]
        %v748 = vld [vmem:[#allocation13 + $0x10] sm:$0xff]
        %v749 = vld [vmem:[#allocation13 + $0x18] sm:$0xff]
        %v750 = vld [vmem:[#allocation13 + $0x20] sm:$0xff]
        %v751 = vld [vmem:[#allocation13 + $0x28] sm:$0xff]
        %v752 = vld [vmem:[#allocation13 + $0x30] sm:$0xff]
        %v753 = vld [vmem:[#allocation13 + $0x38] sm:$0xff]
        %v754 = vld [vmem:[#allocation13 + $0x40] sm:$0xff]
        %v755 = vld [vmem:[#allocation13 + $0x48] sm:$0xff]
        %v756 = vld [vmem:[#allocation13 + $0x50] sm:$0xff]
        %v757 = vld [vmem:[#allocation13 + $0x58] sm:$0xff]
        %v758 = vld [vmem:[#allocation13 + $0x60] sm:$0xff]
        %v759 = vld [vmem:[#allocation13 + $0x68] sm:$0xff]
        %v760 = vld [vmem:[#allocation13 + $0x70] sm:$0xff]
        %v761 = vld [vmem:[#allocation13 + $0x78] sm:$0xff]
        %v762 = vld [vmem:[%s391] sm:$0x3]
        %v764 = vlaneseq
        %v765 = vshrl.u32 %v764, 7
        %v766 = vsub.s32 0, %v765
        %v767 = vrot.slane %v762, %v766
        %v768 = vlaneseq
        %v769 = vshrl.u32 %v768, 7
        %v770 = vsub.s32 1, %v769
        %v771 = vrot.slane %v762, %v770
        %v790 = vunpack.c.l.b16 %v746
        %v791 = vunpack.c.h.b16 %v746
        %v792 = vunpack.c.l.b16 %v747
        %v793 = vunpack.c.h.b16 %v747
        %v794 = vunpack.c.l.b16 %v748
        %v795 = vunpack.c.h.b16 %v748
        %v796 = vunpack.c.l.b16 %v749
        %v797 = vunpack.c.h.b16 %v749
        %v798 = vunpack.c.l.b16 %v750
        %v799 = vunpack.c.h.b16 %v750
        %v800 = vunpack.c.l.b16 %v751
        %v801 = vunpack.c.h.b16 %v751
        %v802 = vunpack.c.l.b16 %v752
        %v803 = vunpack.c.h.b16 %v752
        %v804 = vunpack.c.l.b16 %v753
        %v805 = vunpack.c.h.b16 %v753
        %v806 = vunpack.c.l.b16 %v754
        %v807 = vunpack.c.h.b16 %v754
        %v808 = vunpack.c.l.b16 %v755
        %v809 = vunpack.c.h.b16 %v755
        %v810 = vunpack.c.l.b16 %v756
        %v811 = vunpack.c.h.b16 %v756
        %v812 = vunpack.c.l.b16 %v757
        %v813 = vunpack.c.h.b16 %v757
        %v814 = vunpack.c.l.b16 %v758
        %v815 = vunpack.c.h.b16 %v758
        %v816 = vunpack.c.l.b16 %v759
        %v817 = vunpack.c.h.b16 %v759
        %v818 = vunpack.c.l.b16 %v760
        %v819 = vunpack.c.h.b16 %v760
        %v820 = vunpack.c.l.b16 %v761
        %v821 = vunpack.c.h.b16 %v761
        %v822 = vpack.c.b16 %v792, %v790
        %v823 = vpack.c.b16 %v793, %v791
        %v824 = vpack.c.b16 %v796, %v794
        %v825 = vpack.c.b16 %v797, %v795
        %v826 = vpack.c.b16 %v800, %v798
        %v827 = vpack.c.b16 %v801, %v799
        %v828 = vpack.c.b16 %v804, %v802
        %v829 = vpack.c.b16 %v805, %v803
        %v830 = vpack.c.b16 %v808, %v806
        %v831 = vpack.c.b16 %v809, %v807
        %v832 = vpack.c.b16 %v812, %v810
        %v833 = vpack.c.b16 %v813, %v811
        %v834 = vpack.c.b16 %v816, %v814
        %v835 = vpack.c.b16 %v817, %v815
        %v836 = vpack.c.b16 %v820, %v818
        %v837 = vpack.c.b16 %v821, %v819
        %854 = vmatprep.subr.bf16.mxu0 %v823
        %855 = vmatpush1.bf16.msra.mxu0 %v822
        %856 = vmatprep.subr.bf16.mxu0 %v825
        %857 = vmatpush1.bf16.msra.mxu0 %v824
        %858 = vmatprep.subr.bf16.mxu0 %v827
        %859 = vmatpush1.bf16.msra.mxu0 %v826
        %860 = vmatprep.subr.bf16.mxu0 %v829
        %861 = vmatpush1.bf16.msra.mxu0 %v828
        %862 = vmatprep.subr.bf16.mxu0 %v831
        %863 = vmatpush1.bf16.msra.mxu0 %v830
        %864 = vmatprep.subr.bf16.mxu0 %v833
        %865 = vmatpush1.bf16.msra.mxu0 %v832
        %866 = vmatprep.subr.bf16.mxu0 %v835
        %867 = vmatpush1.bf16.msra.mxu0 %v834
        %868 = vmatprep.subr.bf16.mxu0 %v837
        %869 = vmatpush1.bf16.msra.mxu0 %v836
        %870 = vmatprep.subr.bf16.mxu0 0
        %871 = vmatpush1.bf16.msra.mxu0 0
        %872 = vmatprep.subr.bf16.mxu0 0
        %873 = vmatpush1.bf16.msra.mxu0 0
        %874 = vmatprep.subr.bf16.mxu0 0
        %875 = vmatpush1.bf16.msra.mxu0 0
        %876 = vmatprep.subr.bf16.mxu0 0
        %877 = vmatpush1.bf16.msra.mxu0 0
        %878 = vmatprep.subr.bf16.mxu0 0
        %879 = vmatpush1.bf16.msra.mxu0 0
        %880 = vmatprep.subr.bf16.mxu0 0
        %881 = vmatpush1.bf16.msra.mxu0 0
        %882 = vmatprep.subr.bf16.mxu0 0
        %883 = vmatpush1.bf16.msra.mxu0 0
        %884 = vmatprep.subr.bf16.mxu0 0
        %885 = vmatpush1.bf16.msra.mxu0 0
        %886 = vmatprep.mubr.bf16.mxu0 0
        %887 = vmatmul.mubr.bf16.gmra.mrb[0].mxu0 %v744
        %v888 = vpop.f32.mrb[0].mxu0
        %v889 = vadd.f32 %v767, %v888
        %v890 = vpop.f32.mrb[0].mxu0
        %v891 = vadd.f32 %v771, %v890
        %v892 = vpop.f32.mrb[0].mxu0
        %v893 = vadd.f32 %v767, %v892
        %v894 = vpop.f32.mrb[0].mxu0
        %v895 = vadd.f32 %v771, %v894
        %896 = vmatprep.mubr.bf16.mxu0 0
        %897 = vmatmul.mubr.bf16.gmra.mrb[0].mxu0 %v745
        %v898 = vpop.f32.mrb[0].mxu0
        %v899 = vadd.f32 %v767, %v898
        %v900 = vpop.f32.mrb[0].mxu0
        %v901 = vadd.f32 %v771, %v900
        %v902 = vpop.f32.mrb[0].mxu0
        %v903 = vadd.f32 %v767, %v902
        %v904 = vpop.f32.mrb[0].mxu0
        %v905 = vadd.f32 %v771, %v904
        %906 = vdwg.mxu0
        %907 = vst [vmem:[%s386] sm:$0xff] %v889
        %908 = vst [vmem:[%s386 + $0x8] sm:$0xff] %v891
        %909 = vst [vmem:[%s386 + $0x10] sm:$0xff] %v893
        %910 = vst [vmem:[%s386 + $0x18] sm:$0xff] %v895
        %911 = vst [vmem:[%s386 + $0x20] sm:$0xff] %v899
        %912 = vst [vmem:[%s386 + $0x28] sm:$0xff] %v901
        %913 = vst [vmem:[%s386 + $0x30] sm:$0xff] %v903
        %914 = vst [vmem:[%s386 + $0x38] sm:$0xff] %v905
        %s915 = sand.u32 %s233, 1
        %s916 = scalar_lea.sflag [#allocation9], %s915
        %s917 = sand.u32 %s233, 1
        %s918 = smul.addr %s917, 64
        %s919 = scalar_lea.vmem [#allocation15], %s918
        // Predicated region
        $region80: #{tpu_custom_call.1} parent=51 // pred_check
          %p920 = pneg %p243
        $region81: #{tpu_custom_call.1} parent=51 // pred_check_branch
          %922 = sbr.rel (%p920) target = $region83
        $region82: #{tpu_custom_call.1} parent=51 // pred_region
          %s923 = smul.u32 4, %s37
          %s924 = smul.u32 2, %s38
          %s926 = ssub.s32 1024, 1024
          %927 = vsyncadd %s916, %s926
          %s928 = smul.addr %s923, 2
          %s929 = sadd.s32 %s924, %s928
          %s930 = smul.addr %s929, 128
          %s931 = scalar_lea.hbm %s9, %s930
          %s932 = sshll.u32 %s919, 4
          %s933 = int_to_ptr.vmem [resolvable:$true] %s932
          %938 = dma.vmem_to_hbm [thread:$0]  %s933, 1024, %s931, %s916, 256, 256, 16
        $region83: #{tpu_custom_call.1} parent=51 // pred_fallthru
          _
      $region52: #{tpu_custom_call.1} parent=5 // pred_fallthru
        _
      %p939 = scmp.le.s32.totalorder 2, %s28
      // Predicated region
      $region84: #{tpu_custom_call.1} parent=5 // pred_check
        %p940 = pneg %p939
      $region85: #{tpu_custom_call.1} parent=5 // pred_check_branch
        %942 = sbr.rel (%p940) target = $region87
      $region86: #{tpu_custom_call.1} parent=5 // pred_region
        %s943 = ssub.s32 %s28, 2
        // Predicated region
        $region88: #{tpu_custom_call.1} parent=86 // pred_check
          %p944 = pneg %p249
        $region89: #{tpu_custom_call.1} parent=86 // pred_check_branch
          %946 = sbr.rel (%p944) target = $region91
        $region90: #{tpu_custom_call.1} parent=86 // pred_region
          %s947 = sand.u32 %s234, 1
          %s948 = scalar_lea.sflag [#allocation9], %s947
          %s949 = sand.u32 %s234, 1
          %s950 = smul.addr %s949, 64
          %s951 = scalar_lea.vmem [#allocation15], %s950
          %952 = dma.done %s948, 1024
        $region91: #{tpu_custom_call.1} parent=86 // pred_fallthru
          _
      $region87: #{tpu_custom_call.1} parent=5 // pred_fallthru
        _
    $region6: #{tpu_custom_call.1} parent=1 // loop_footer
      %s32 = sadd.s32 1, %s28
    $region7: #{tpu_custom_call.1} parent=1 // loop_footer_branch
      %27 = sbr.rel target = $region3
    $region8: #{tpu_custom_call.1} parent=1 // loop_exit
      _
    %953 = vsyncpa [#allocation8], 1
    %s954 = scalar_lea.sflag [#allocation8], 1
    %955 = vsyncpa %s954, 1
    %956 = vsyncpa [#allocation11], 1
    %957 = vsyncpa [#allocation14], 1
    %958 = vsyncpa [#allocation9], 1
    %s959 = scalar_lea.sflag [#allocation9], 1
    %960 = vsyncpa %s959, 1

</llo_original>
